<compile_context>
chip_gen: v7x
topology: tpu7x:2x2x1
jax: 0.10.0
libtpu: 0.0.40
codegen_flags: <defaults>
</compile_context>

<pallas_src>
import functools

import jax
import jax.numpy as jnp
from jax.experimental import pallas as pl
from jax.experimental.pallas import tpu as pltpu


def _decoder_ffn_stack_kernel(x_ref, w1_ref, b1_ref, w2_ref, b2_ref, g_ref, beta_ref,
                              o_ref, acc_ref, *, c_real, f_block, num_f_blocks):
    """One (row-tile, layer) grid step of the stacked FFN decoder.

    x_ref:   (TM, Cp)  input rows (resident across the layer axis)
    w1_ref:  (Cp, Fp)  layer-l linear1 weight (pre-transposed, mxu dtype)
    b1_ref:  (1, Fp)   f32
    w2_ref:  (Fp, Cp)  layer-l linear2 weight (pre-transposed, mxu dtype)
    b2_ref:  (1, Cp)   f32
    g_ref/beta_ref: (1, Cp) LayerNorm affine (f32)
    o_ref:   (TM, Cp)  output rows (written at the last layer only)
    acc_ref: (TM, Cp)  f32 VMEM scratch carrying the state across layers
    """
    layer = pl.program_id(1)

    @pl.when(layer == 0)
    def _():
        acc_ref[...] = x_ref[...].astype(jnp.float32)

    t = acc_ref[...]                                    # (TM, Cp) f32 carried state
    mm_dtype = w1_ref.dtype                             # bf16 fast path by default
    t_mm = t.astype(mm_dtype)

    # --- FFN: linear1 -> ReLU -> linear2, blocked over the hidden dimension so
    # the (TM, F) hidden activation is never fully materialized (VMEM pressure).
    y = jnp.zeros_like(t)
    for fb in range(num_f_blocks):
        f0 = fb * f_block
        w1c = w1_ref[:, f0:f0 + f_block]                # (Cp, FB)   static slice
        b1c = b1_ref[:, f0:f0 + f_block]                # (1, FB)
        h = jnp.dot(t_mm, w1c, preferred_element_type=jnp.float32)
        h = jnp.maximum(h + b1c.astype(jnp.float32), 0.0)
        w2c = w2_ref[f0:f0 + f_block, :]                # (FB, Cp)   static slice
        y = y + jnp.dot(h.astype(mm_dtype), w2c, preferred_element_type=jnp.float32)
    y = y + b2_ref[...].astype(jnp.float32)

    # --- residual + LayerNorm (f32 epilogue, eps=1e-5 like torch.nn.LayerNorm).
    # Single-pass statistics; padded columns of t are exactly zero, so sums over
    # the padded width equal sums over the real C -> divide by the real C.
    t = t + y
    inv_c = 1.0 / float(c_real)
    s1 = jnp.sum(t, axis=-1, keepdims=True)
    s2 = jnp.sum(t * t, axis=-1, keepdims=True)
    mean = s1 * inv_c
    var = jnp.maximum(s2 * inv_c - mean * mean, 0.0)
    out = (t - mean) * jax.lax.rsqrt(var + 1e-5)
    out = out * g_ref[...].astype(jnp.float32) + beta_ref[...].astype(jnp.float32)

    acc_ref[...] = out                                  # feeds the next layer

    @pl.when(layer == pl.num_programs(1) - 1)
    def _():
        o_ref[...] = out.astype(o_ref.dtype)


def _round_up(x, m):
    return (x + m - 1) // m * m


def _tpu_vmem_bytes():
    try:
        return int(pltpu.get_tpu_info().vmem_capacity_bytes)
    except Exception:
        return 64 * 1024 * 1024   # conservative fallback (v7x-sized)


def _pick_tile_m(m_rows, cp, fp, f_block, x_it, w_it, budget, tile_cap):
    """Largest TILE_M (multiple of 8, <= tile_cap) whose working set fits budget."""
    # double-buffered per-layer params (w1, w2 in mxu dtype; b1, b2, gamma, beta f32)
    weight_bytes = 2 * (2 * cp * fp * w_it + (fp + 3 * cp) * 4)
    tile = min(tile_cap, _round_up(m_rows, 8))
    tile = max(8, tile - tile % 8)
    while tile > 8:
        act = (4 * tile * cp * x_it            # double-buffered input + output tiles
               + tile * cp * (4 + 4 + 2)       # f32 carry + f32 y acc + bf16 cast of t
               + tile * f_block * (4 + 2))     # f32 hidden chunk + its bf16 cast
        if weight_bytes + act <= budget:
            break
        tile = max(8, (tile // 2) - (tile // 2) % 8)
    return tile


def transformer_decoder_forward(tgt, w1, b1, w2, b2, ln_w, ln_b, *,
                                tile_m=None, f_block=None,
                                mxu_dtype=jnp.bfloat16):
    """TransformerDecoder(decoder_layer=FFN block, norm=None, return_intermediate=False).

    tgt:        (S, N, C)  seq, batch, d_model (PyTorch transformer layout)
    w1:         (L, C, F)  per-layer linear1 weight (pre-transposed)
    b1:         (L, F)
    w2:         (L, F, C)  per-layer linear2 weight (pre-transposed)
    b2:         (L, C)
    ln_w, ln_b: (L, C)     per-layer LayerNorm affine params

    Returns (1, S, N, C), matching `output.unsqueeze(0)`.
    """
    S, N, C = tgt.shape
    L, _, F = w1.shape
    M = S * N

    # --- lane-dense padding of C and F to multiples of 128 (unmasked stores,
    # dense MXU lanes); zero padding keeps padded columns exactly zero through
    # residual + LN (gamma/beta padded with zeros), so semantics are preserved.
    Cp = _round_up(C, 128)
    if f_block is None:
        f_block = min(_round_up(F, 128), 512)
    f_block = _round_up(f_block, 128)
    Fp = _round_up(F, f_block)
    num_f_blocks = Fp // f_block

    # --- generation-aware VMEM budget / limit (v5e & v6e: 128 MiB, v7x: 64 MiB).
    phys_vmem = _tpu_vmem_bytes()
    if phys_vmem > 96 * 1024 * 1024:            # v5e / v6e
        budget, limit_cap, tile_cap = 100 << 20, 110 << 20, 1024
    else:                                        # v7x (leave compiler headroom)
        budget, limit_cap, tile_cap = 40 << 20, 56 << 20, 1024

    x_it = tgt.dtype.itemsize
    w_it = jnp.dtype(mxu_dtype).itemsize

    auto_tile = tile_m is None
    if auto_tile:
        tile_m = _pick_tile_m(_round_up(M, 8), Cp, Fp, f_block, x_it, w_it,
                              budget, tile_cap)
        # v7x megacore: with a single row tile one TensorCore idles -> split.
        # TODO(synk): choose split vs no-split from a weight-stream/compute
        # roofline instead of always splitting.
        if phys_vmem <= 96 * 1024 * 1024 and M > 8 and tile_m >= 16 \
                and _round_up(M, tile_m) // tile_m == 1:
            tile_m = max(8, (tile_m // 2) - (tile_m // 2) % 8)
    tile_m = max(8, tile_m - tile_m % 8)

    m_pad = _round_up(M, tile_m)
    num_m_tiles = m_pad // tile_m

    # --- pad & lay out operands.
    x2d = tgt.reshape(M, C)
    x2d = jnp.pad(x2d, ((0, m_pad - M), (0, Cp - C)))

    w1p = jnp.pad(w1.astype(mxu_dtype), ((0, 0), (0, Cp - C), (0, Fp - F)))
    w2p = jnp.pad(w2.astype(mxu_dtype), ((0, 0), (0, Fp - F), (0, Cp - C)))
    b1p = jnp.pad(b1.astype(jnp.float32), ((0, 0), (0, Fp - F))).reshape(L, 1, Fp)
    b2p = jnp.pad(b2.astype(jnp.float32), ((0, 0), (0, Cp - C))).reshape(L, 1, Cp)
    g3d = jnp.pad(ln_w.astype(jnp.float32), ((0, 0), (0, Cp - C))).reshape(L, 1, Cp)
    beta3d = jnp.pad(ln_b.astype(jnp.float32), ((0, 0), (0, Cp - C))).reshape(L, 1, Cp)

    # --- VMEM limit: actual working-set estimate with slack, generation-capped.
    weight_bytes = 2 * (2 * Cp * Fp * w_it + (Fp + 3 * Cp) * 4)
    act_bytes = (4 * tile_m * Cp * x_it
                 + tile_m * Cp * (4 + 4 + 2)
                 + tile_m * f_block * (4 + 2))
    need = weight_bytes + act_bytes
    vmem_limit = int(min(max(int(1.3 * need), 32 << 20), limit_cap))

    # --- cost estimate: weights are re-streamed once per row tile.
    cost = pl.CostEstimate(
        flops=int(4 * m_pad * Cp * Fp * L),
        transcendentals=int(m_pad * L),
        bytes_accessed=int(2 * m_pad * Cp * x_it
                           + num_m_tiles * L * (2 * Cp * Fp * w_it
                                                + (Fp + 3 * Cp) * 4)),
    )

    kernel = functools.partial(_decoder_ffn_stack_kernel,
                               c_real=C, f_block=f_block,
                               num_f_blocks=num_f_blocks)

    out2d = pl.pallas_call(
        kernel,
        out_shape=jax.ShapeDtypeStruct((m_pad, Cp), tgt.dtype),
        grid_spec=pltpu.PrefetchScalarGridSpec(
            num_scalar_prefetch=0,
            grid=(num_m_tiles, L),
            in_specs=[
                pl.BlockSpec((tile_m, Cp), lambda i, l: (i, 0)),       # rows (resident over l)
                pl.BlockSpec((None, Cp, Fp), lambda i, l: (l, 0, 0)),  # w1[l]
                pl.BlockSpec((None, 1, Fp), lambda i, l: (l, 0, 0)),   # b1[l]
                pl.BlockSpec((None, Fp, Cp), lambda i, l: (l, 0, 0)),  # w2[l]
                pl.BlockSpec((None, 1, Cp), lambda i, l: (l, 0, 0)),   # b2[l]
                pl.BlockSpec((None, 1, Cp), lambda i, l: (l, 0, 0)),   # ln gamma[l]
                pl.BlockSpec((None, 1, Cp), lambda i, l: (l, 0, 0)),   # ln beta[l]
            ],
            out_specs=pl.BlockSpec((tile_m, Cp), lambda i, l: (i, 0)),
            scratch_shapes=[pltpu.VMEM((tile_m, Cp), jnp.float32)],
        ),
        compiler_params=pltpu.CompilerParams(
            # row tiles independent -> megacore-parallel on v7x;
            # layer axis carries f32 state in scratch -> arbitrary (sequential).
            dimension_semantics=("parallel", "arbitrary"),
            vmem_limit_bytes=vmem_limit,
        ),
        cost_estimate=cost,
    )(x2d, w1p, b1p, w2p, b2p, g3d, beta3d)

    out = out2d[:M, :C].reshape(S, N, C)
    return out[None]  # TransformerDecoder returns output.unsqueeze(0)


if __name__ == "__main__":
    # Small, lane-friendly shapes. f_block=128 exercises the F-blocked inner loop
    # (2 chunks); tile_m=16 gives a 2 row-tiles x 2 layers grid.
    S, N, C, F, L = 16, 2, 128, 256, 2

    key = jax.random.PRNGKey(0)
    keys = jax.random.split(key, 2 + 4 * L)

    tgt = jax.random.normal(keys[0], (S, N, C), dtype=jnp.float32)

    def xavier(k, shape, fan_in, fan_out):
        bound = (6.0 / (fan_in + fan_out)) ** 0.5
        return jax.random.uniform(k, shape, jnp.float32, -bound, bound)

    w1 = jnp.stack([xavier(keys[2 + 4 * l + 0], (C, F), C, F) for l in range(L)])
    b1 = jnp.stack([jax.random.uniform(keys[2 + 4 * l + 1], (F,), jnp.float32,
                                       -1.0 / C ** 0.5, 1.0 / C ** 0.5)
                    for l in range(L)])
    w2 = jnp.stack([xavier(keys[2 + 4 * l + 2], (F, C), F, C) for l in range(L)])
    b2 = jnp.stack([jax.random.uniform(keys[2 + 4 * l + 3], (C,), jnp.float32,
                                       -1.0 / F ** 0.5, 1.0 / F ** 0.5)
                    for l in range(L)])
    ln_w = jnp.ones((L, C), jnp.float32)   # PyTorch LayerNorm default affine
    ln_b = jnp.zeros((L, C), jnp.float32)

    out = transformer_decoder_forward(tgt, w1, b1, w2, b2, ln_w, ln_b,
                                      tile_m=16, f_block=128)
    out = jax.block_until_ready(out)

    # Pure-JAX f32 reference of the same decoder stack, using the same bf16-rounded
    # weights the kernel consumes (so the check isolates kernel math, not weight
    # quantization; vs the pure-f32 module the only extra diff is that rounding).
    w1_q = w1.astype(jnp.bfloat16).astype(jnp.float32)
    w2_q = w2.astype(jnp.bfloat16).astype(jnp.float32)

    def ref(x):
        o = x
        for l in range(L):
            h = jnp.maximum(jnp.dot(o, w1_q[l]) + b1[l], 0.0)
            y = jnp.dot(h, w2_q[l]) + b2[l]
            t = o + y
            mu = t.mean(-1, keepdims=True)
            var = ((t - mu) ** 2).mean(-1, keepdims=True)
            o = (t - mu) * jax.lax.rsqrt(var + 1e-5) * ln_w[l] + ln_b[l]
        return o[None]

    expected = ref(tgt)
    assert out.shape == (1, S, N, C)
    max_err = float(jnp.max(jnp.abs(out - expected)))
    assert jnp.allclose(out, expected, atol=2e-2, rtol=2e-2), max_err

    print("KERNEL_OK")
</pallas_src>

<mosaic_0001>
module attributes {stable_mosaic.version = 11 : i64} {
  func.func @_decoder_ffn_stack_kernel(%arg0: i32, %arg1: i32, %arg2: memref<16x128xf32, #tpu.memory_space<vmem>>, %arg3: memref<1x128x256xbf16, #tpu.memory_space<vmem>>, %arg4: memref<1x1x256xf32, #tpu.memory_space<vmem>>, %arg5: memref<1x256x128xbf16, #tpu.memory_space<vmem>>, %arg6: memref<1x1x128xf32, #tpu.memory_space<vmem>>, %arg7: memref<1x1x128xf32, #tpu.memory_space<vmem>>, %arg8: memref<1x1x128xf32, #tpu.memory_space<vmem>>, %arg9: memref<16x128xf32, #tpu.memory_space<vmem>>, %arg10: memref<16x128xf32, #tpu.memory_space<vmem>>) attributes {dimension_semantics = [#tpu.dimension_semantics<parallel>, #tpu.dimension_semantics<arbitrary>], iteration_bounds = array<i64: 2, 2>, scalar_prefetch = 0 : i64, scratch_operands = 1 : i64, tpu.core_type = #tpu.core_type<tc>, window_params = [{transform_indices = @transform_0, window_bounds = array<i64: 16, 128>}, {transform_indices = @transform_1, window_bounds = array<i64: 1, 128, 256>}, {transform_indices = @transform_2, window_bounds = array<i64: 1, 1, 256>}, {transform_indices = @transform_3, window_bounds = array<i64: 1, 256, 128>}, {transform_indices = @transform_4, window_bounds = array<i64: 1, 1, 128>}, {transform_indices = @transform_5, window_bounds = array<i64: 1, 1, 128>}, {transform_indices = @transform_6, window_bounds = array<i64: 1, 1, 128>}, {transform_indices = @transform_7, window_bounds = array<i64: 16, 128>}]} {
    %c0_i32 = arith.constant 0 : i32
    %0 = arith.cmpi eq, %arg1, %c0_i32 : i32
    %1 = arith.extui %0 : i1 to i32
    %c0_i32_0 = arith.constant 0 : i32
    %2 = arith.cmpi ne, %1, %c0_i32_0 : i32
    scf.if %2 {
      %c0_43 = arith.constant 0 : index
      %c0_44 = arith.constant 0 : index
      %71 = vector.load %arg2[%c0_43, %c0_44] : memref<16x128xf32, #tpu.memory_space<vmem>>, vector<16x128xf32>
      %c0_45 = arith.constant 0 : index
      %c0_46 = arith.constant 0 : index
      %72 = vector.load %arg10[%c0_45, %c0_46] : memref<16x128xf32, #tpu.memory_space<vmem>>, vector<16x128xf32>
      tpu.vector_store %arg10[%c0_45, %c0_46], %71 {strides = array<i32>} : memref<16x128xf32, #tpu.memory_space<vmem>>, vector<16x128xf32>,
    } else {
    }
    %c0 = arith.constant 0 : index
    %c0_1 = arith.constant 0 : index
    %3 = vector.load %arg10[%c0, %c0_1] : memref<16x128xf32, #tpu.memory_space<vmem>>, vector<16x128xf32>
    %4 = arith.truncf %3 : vector<16x128xf32> to vector<16x128xbf16>
    %cst = arith.constant 0.000000e+00 : f32
    %5 = vector.broadcast %cst : f32 to vector<16x128xf32>
    %c0_2 = arith.constant 0 : index
    %c0_3 = arith.constant 0 : index
    %c0_4 = arith.constant 0 : index
    %6 = vector.load %arg3[%c0_2, %c0_3, %c0_4] : memref<1x128x256xbf16, #tpu.memory_space<vmem>>, vector<1x128x128xbf16>
    %7 = vector.shape_cast %6 : vector<1x128x128xbf16> to vector<128x128xbf16>
    %c0_5 = arith.constant 0 : index
    %c0_6 = arith.constant 0 : index
    %c0_7 = arith.constant 0 : index
    %8 = vector.load %arg4[%c0_5, %c0_6, %c0_7] : memref<1x1x256xf32, #tpu.memory_space<vmem>>, vector<1x1x128xf32>
    %9 = vector.shape_cast %8 : vector<1x1x128xf32> to vector<1x128xf32>
    %cst_8 = arith.constant dense<0.000000e+00> : vector<16x128xf32>
    %10 = tpu.matmul %4, %7, %cst_8 {dimension_numbers = #tpu.dot_dimension_numbers<[1], [0], [0], [1], [0, 0, 1, 1], [], []>} : vector<16x128xbf16>, vector<128x128xbf16>, vector<16x128xf32> -> vector<16x128xf32>
    %11 = vector.broadcast %9 : vector<1x128xf32> to vector<16x128xf32>
    %12 = arith.addf %10, %11 : vector<16x128xf32>
    %cst_9 = arith.constant 0.000000e+00 : f32
    %13 = vector.broadcast %cst_9 : f32 to vector<16x128xf32>
    %14 = arith.maximumf %12, %13 : vector<16x128xf32>
    %c0_10 = arith.constant 0 : index
    %c0_11 = arith.constant 0 : index
    %c0_12 = arith.constant 0 : index
    %15 = vector.load %arg5[%c0_10, %c0_11, %c0_12] : memref<1x256x128xbf16, #tpu.memory_space<vmem>>, vector<1x128x128xbf16>
    %16 = vector.shape_cast %15 : vector<1x128x128xbf16> to vector<128x128xbf16>
    %17 = arith.truncf %14 : vector<16x128xf32> to vector<16x128xbf16>
    %cst_13 = arith.constant dense<0.000000e+00> : vector<16x128xf32>
    %18 = tpu.matmul %17, %16, %cst_13 {dimension_numbers = #tpu.dot_dimension_numbers<[1], [0], [0], [1], [0, 0, 1, 1], [], []>} : vector<16x128xbf16>, vector<128x128xbf16>, vector<16x128xf32> -> vector<16x128xf32>
    %19 = arith.addf %5, %18 : vector<16x128xf32>
    %c0_14 = arith.constant 0 : index
    %c0_15 = arith.constant 0 : index
    %c128 = arith.constant 128 : index
    %20 = vector.load %arg3[%c0_14, %c0_15, %c128] : memref<1x128x256xbf16, #tpu.memory_space<vmem>>, vector<1x128x128xbf16>
    %21 = vector.shape_cast %20 : vector<1x128x128xbf16> to vector<128x128xbf16>
    %c0_16 = arith.constant 0 : index
    %c0_17 = arith.constant 0 : index
    %c128_18 = arith.constant 128 : index
    %22 = vector.load %arg4[%c0_16, %c0_17, %c128_18] : memref<1x1x256xf32, #tpu.memory_space<vmem>>, vector<1x1x128xf32>
    %23 = vector.shape_cast %22 : vector<1x1x128xf32> to vector<1x128xf32>
    %cst_19 = arith.constant dense<0.000000e+00> : vector<16x128xf32>
    %24 = tpu.matmul %4, %21, %cst_19 {dimension_numbers = #tpu.dot_dimension_numbers<[1], [0], [0], [1], [0, 0, 1, 1], [], []>} : vector<16x128xbf16>, vector<128x128xbf16>, vector<16x128xf32> -> vector<16x128xf32>
    %25 = vector.broadcast %23 : vector<1x128xf32> to vector<16x128xf32>
    %26 = arith.addf %24, %25 : vector<16x128xf32>
    %cst_20 = arith.constant 0.000000e+00 : f32
    %27 = vector.broadcast %cst_20 : f32 to vector<16x128xf32>
    %28 = arith.maximumf %26, %27 : vector<16x128xf32>
    %c0_21 = arith.constant 0 : index
    %c128_22 = arith.constant 128 : index
    %c0_23 = arith.constant 0 : index
    %29 = vector.load %arg5[%c0_21, %c128_22, %c0_23] : memref<1x256x128xbf16, #tpu.memory_space<vmem>>, vector<1x128x128xbf16>
    %30 = vector.shape_cast %29 : vector<1x128x128xbf16> to vector<128x128xbf16>
    %31 = arith.truncf %28 : vector<16x128xf32> to vector<16x128xbf16>
    %cst_24 = arith.constant dense<0.000000e+00> : vector<16x128xf32>
    %32 = tpu.matmul %31, %30, %cst_24 {dimension_numbers = #tpu.dot_dimension_numbers<[1], [0], [0], [1], [0, 0, 1, 1], [], []>} : vector<16x128xbf16>, vector<128x128xbf16>, vector<16x128xf32> -> vector<16x128xf32>
    %33 = arith.addf %19, %32 : vector<16x128xf32>
    %c0_25 = arith.constant 0 : index
    %c0_26 = arith.constant 0 : index
    %c0_27 = arith.constant 0 : index
    %34 = vector.load %arg6[%c0_25, %c0_26, %c0_27] : memref<1x1x128xf32, #tpu.memory_space<vmem>>, vector<1x1x128xf32>
    %35 = vector.shape_cast %34 : vector<1x1x128xf32> to vector<1x128xf32>
    %36 = vector.broadcast %35 : vector<1x128xf32> to vector<16x128xf32>
    %37 = arith.addf %33, %36 : vector<16x128xf32>
    %38 = arith.addf %3, %37 : vector<16x128xf32>
    %cst_28 = arith.constant dense<0.000000e+00> : vector<16xf32>
    %39 = vector.multi_reduction <add>, %38, %cst_28 [1] : vector<16x128xf32> to vector<16xf32>
    %40 = vector.shape_cast %39 : vector<16xf32> to vector<16x1xf32>
    %41 = arith.mulf %38, %38 : vector<16x128xf32>
    %cst_29 = arith.constant dense<0.000000e+00> : vector<16xf32>
    %42 = vector.multi_reduction <add>, %41, %cst_29 [1] : vector<16x128xf32> to vector<16xf32>
    %43 = vector.shape_cast %42 : vector<16xf32> to vector<16x1xf32>
    %cst_30 = arith.constant 7.812500e-03 : f32
    %44 = vector.broadcast %cst_30 : f32 to vector<16x1xf32>
    %45 = arith.mulf %40, %44 : vector<16x1xf32>
    %cst_31 = arith.constant 7.812500e-03 : f32
    %46 = vector.broadcast %cst_31 : f32 to vector<16x1xf32>
    %47 = arith.mulf %43, %46 : vector<16x1xf32>
    %48 = arith.mulf %45, %45 : vector<16x1xf32>
    %49 = arith.subf %47, %48 : vector<16x1xf32>
    %cst_32 = arith.constant 0.000000e+00 : f32
    %50 = vector.broadcast %cst_32 : f32 to vector<16x1xf32>
    %51 = arith.maximumf %49, %50 : vector<16x1xf32>
    %52 = vector.broadcast %45 : vector<16x1xf32> to vector<16x128xf32>
    %53 = arith.subf %38, %52 : vector<16x128xf32>
    %cst_33 = arith.constant 9.99999974E-6 : f32
    %54 = vector.broadcast %cst_33 : f32 to vector<16x1xf32>
    %55 = arith.addf %51, %54 : vector<16x1xf32>
    %56 = math.rsqrt %55 : vector<16x1xf32>
    %57 = vector.broadcast %56 : vector<16x1xf32> to vector<16x128xf32>
    %58 = arith.mulf %53, %57 : vector<16x128xf32>
    %c0_34 = arith.constant 0 : index
    %c0_35 = arith.constant 0 : index
    %c0_36 = arith.constant 0 : index
    %59 = vector.load %arg7[%c0_34, %c0_35, %c0_36] : memref<1x1x128xf32, #tpu.memory_space<vmem>>, vector<1x1x128xf32>
    %60 = vector.shape_cast %59 : vector<1x1x128xf32> to vector<1x128xf32>
    %61 = vector.broadcast %60 : vector<1x128xf32> to vector<16x128xf32>
    %62 = arith.mulf %58, %61 : vector<16x128xf32>
    %c0_37 = arith.constant 0 : index
    %c0_38 = arith.constant 0 : index
    %c0_39 = arith.constant 0 : index
    %63 = vector.load %arg8[%c0_37, %c0_38, %c0_39] : memref<1x1x128xf32, #tpu.memory_space<vmem>>, vector<1x1x128xf32>
    %64 = vector.shape_cast %63 : vector<1x1x128xf32> to vector<1x128xf32>
    %65 = vector.broadcast %64 : vector<1x128xf32> to vector<16x128xf32>
    %66 = arith.addf %62, %65 : vector<16x128xf32>
    %c0_40 = arith.constant 0 : index
    %c0_41 = arith.constant 0 : index
    %67 = vector.load %arg10[%c0_40, %c0_41] : memref<16x128xf32, #tpu.memory_space<vmem>>, vector<16x128xf32>
    tpu.vector_store %arg10[%c0_40, %c0_41], %66 {strides = array<i32>} : memref<16x128xf32, #tpu.memory_space<vmem>>, vector<16x128xf32>,
    %c1_i32 = arith.constant 1 : i32
    %68 = arith.cmpi eq, %arg1, %c1_i32 : i32
    %69 = arith.extui %68 : i1 to i32
    %c0_i32_42 = arith.constant 0 : i32
    %70 = arith.cmpi ne, %69, %c0_i32_42 : i32
    scf.if %70 {
      %c0_43 = arith.constant 0 : index
      %c0_44 = arith.constant 0 : index
      %71 = vector.load %arg9[%c0_43, %c0_44] : memref<16x128xf32, #tpu.memory_space<vmem>>, vector<16x128xf32>
      tpu.vector_store %arg9[%c0_43, %c0_44], %66 {strides = array<i32>} : memref<16x128xf32, #tpu.memory_space<vmem>>, vector<16x128xf32>,
    } else {
    }
    return
  }
  func.func @transform_0(%arg0: i32, %arg1: i32) -> (i32, i32) {
    %c0_i32 = arith.constant 0 : i32
    %c0_i32_0 = arith.constant 0 : i32
    return %arg0, %c0_i32 : i32, i32
  }
  func.func @transform_1(%arg0: i32, %arg1: i32) -> (i32, i32, i32) {
    %c0_i32 = arith.constant 0 : i32
    %c0_i32_0 = arith.constant 0 : i32
    %c0_i32_1 = arith.constant 0 : i32
    return %arg1, %c0_i32, %c0_i32_0 : i32, i32, i32
  }
  func.func @transform_2(%arg0: i32, %arg1: i32) -> (i32, i32, i32) {
    %c0_i32 = arith.constant 0 : i32
    %c0_i32_0 = arith.constant 0 : i32
    %c0_i32_1 = arith.constant 0 : i32
    return %arg1, %c0_i32, %c0_i32_0 : i32, i32, i32
  }
  func.func @transform_3(%arg0: i32, %arg1: i32) -> (i32, i32, i32) {
    %c0_i32 = arith.constant 0 : i32
    %c0_i32_0 = arith.constant 0 : i32
    %c0_i32_1 = arith.constant 0 : i32
    return %arg1, %c0_i32, %c0_i32_0 : i32, i32, i32
  }
  func.func @transform_4(%arg0: i32, %arg1: i32) -> (i32, i32, i32) {
    %c0_i32 = arith.constant 0 : i32
    %c0_i32_0 = arith.constant 0 : i32
    %c0_i32_1 = arith.constant 0 : i32
    return %arg1, %c0_i32, %c0_i32_0 : i32, i32, i32
  }
  func.func @transform_5(%arg0: i32, %arg1: i32) -> (i32, i32, i32) {
    %c0_i32 = arith.constant 0 : i32
    %c0_i32_0 = arith.constant 0 : i32
    %c0_i32_1 = arith.constant 0 : i32
    return %arg1, %c0_i32, %c0_i32_0 : i32, i32, i32
  }
  func.func @transform_6(%arg0: i32, %arg1: i32) -> (i32, i32, i32) {
    %c0_i32 = arith.constant 0 : i32
    %c0_i32_0 = arith.constant 0 : i32
    %c0_i32_1 = arith.constant 0 : i32
    return %arg1, %c0_i32, %c0_i32_0 : i32, i32, i32
  }
  func.func @transform_7(%arg0: i32, %arg1: i32) -> (i32, i32) {
    %c0_i32 = arith.constant 0 : i32
    %c0_i32_0 = arith.constant 0 : i32
    return %arg0, %c0_i32 : i32, i32
  }
}

</mosaic_0001>

<llo_original>
// kernel: tpu_custom_call.1
$region0: #{tpu_custom_call.1}
  #allocation0 [shape = 'u32[]', space=smem, size = 0x4, offset = 0x4, fixed_abs, tag = 'smem constant byte address 0x4 - core index']
  #allocation1 [shape = 'u32[144,128]{1,0:T(1,128)}', space=vmem, size = 0x12000, scoped, tag = 'internal scratch']
  #allocation2 [shape = 'f32[16,128]{1,0:T(8,128)}', space=vmem, size = 0x2000, scoped, tag = 'scratch operand']
  %s0 = inlined_call_operand.hbm [shape: f32[32,128], index: 0, kind: input, shape index: {}]
  %s1 = inlined_call_operand.hbm [shape: bf16[2,128,256], index: 1, kind: input, shape index: {}]
  %s2 = inlined_call_operand.vmem [shape: f32[2,1,256], index: 2, kind: input, shape index: {}]
  %s3 = inlined_call_operand.hbm [shape: bf16[2,256,128], index: 3, kind: input, shape index: {}]
  %s4 = inlined_call_operand.vmem [shape: f32[2,1,128], index: 4, kind: input, shape index: {}]
  %s5 = inlined_call_operand.vmem [shape: f32[2,1,128], index: 5, kind: input, shape index: {}]
  %s6 = inlined_call_operand.vmem [shape: f32[2,1,128], index: 6, kind: input, shape index: {}]
  %s7 = inlined_call_operand.hbm [shape: f32[32,128], index: 7, kind: output, shape index: {}]
  %s8 = sld [smem:[#allocation0]]
  $region81: #{tpu_custom_call.1} parent=0
    _
  %s10 = ssub.s32 1, %s8
  %s11 = scalar_select 0, %s10, %s8
  $region1: #{tpu_custom_call.1} parent=0
    #allocation3 [shape = 'u8[16384]{0}', space=vmem, size = 0x4000, scoped, tag = 'input window, operand 0']
    #allocation4 [shape = 's32[2]{0}', space=sflag, size = 0x8, scoped, tag = 'scoped memory for tpu_custom_call.1']
    #allocation5 [shape = 's32[2]{0}', space=sflag, size = 0x8, scoped, tag = 'scoped memory for tpu_custom_call.1']
    #allocation6 [shape = 'u8[131072]{0}', space=vmem, size = 0x20000, scoped, tag = 'input window, operand 1']
    #allocation7 [shape = 's32[2]{0}', space=sflag, size = 0x8, scoped, tag = 'scoped memory for tpu_custom_call.1']
    #allocation8 [shape = 'u8[131072]{0}', space=vmem, size = 0x20000, scoped, tag = 'input window, operand 3']
    #allocation9 [shape = 'u8[16384]{0}', space=vmem, size = 0x4000, scoped, tag = 'output window, operand 0']
    %12 = vsyncpa [#allocation4], 0
    %s13 = scalar_lea.sflag [#allocation4], 1
    %14 = vsyncpa %s13, 0
    %15 = vsyncpa [#allocation7], 0
    %s16 = scalar_lea.sflag [#allocation7], 1
    %17 = vsyncpa %s16, 0
    %18 = vsyncpa [#allocation5], 0
    %s19 = scalar_lea.sflag [#allocation5], 1
    %20 = vsyncpa %s19, 0
    loop: start=0, step=1, limit=6
    $region2: #{tpu_custom_call.1} parent=1 // loop_pre_header
      _
    $region3: #{tpu_custom_call.1} parent=1 // loop_header
      %s22 = sphi 0, %s26
      %p23 = scmp.ge.s32.totalorder %s22, 6
      %s29 = sphi 0, %s41
      %s30 = sphi 0, %s37
      %s31 = sphi 0, %s29
      %s32 = sphi 0, %s30
      %s33 = sphi 0, %s31
      %s34 = sphi 0, %s32
      %s44 = sphi 0, %s46
      %s47 = sphi 0, %s44
      %s48 = sphi 0, %s47
      %s64 = sphi 0, %s48
      %s70 = sphi 0, %s72
      %s73 = sphi 0, %s70
      %s74 = sphi 0, %s73
      %s90 = sphi 0, %s74
      %s96 = sphi 0, %s98
      %s99 = sphi 0, %s96
      %s100 = sphi 0, %s99
      %s116 = sphi 0, %s100
      %s122 = sphi 0, %s124
      %s125 = sphi 0, %s122
      %s126 = sphi 0, %s125
      %s142 = sphi 0, %s126
      %s148 = sphi 0, %s150
      %s151 = sphi 0, %s148
      %s152 = sphi 0, %s151
      %s168 = sphi 0, %s152
      %s174 = sphi 0, %s176
      %s177 = sphi 0, %s174
      %s178 = sphi 0, %s177
      %s194 = sphi 0, %s178
      %s200 = sphi 0, %s202
      %s203 = sphi 0, %s200
      %s204 = sphi 0, %s203
      %s220 = sphi 0, %s204
      %s226 = sphi 0, %s228
      %s229 = sphi 0, %s226
      %s230 = sphi 0, %s229
      %s246 = sphi 0, %s230
    $region4: #{tpu_custom_call.1} parent=1 // loop_header_branch
      %25 = sbr.rel (%p23) target = $region8
    $region5: #{tpu_custom_call.1} parent=1 // loop_body
      %s27 = ssub.s32 %s22, 1
      %s28 = ssub.s32 %s22, 2
      %s35 = sadd.s32 1, %s30
      %p36 = scmp.ge.s32.totalorder %s35, 2
      %s37 = scalar_select %p36, 0, %s35
      %s38 = sadd.s32 1, %s29
      %s39 = scalar_select %p36, %s38, %s29
      %p40 = scmp.ge.s32.totalorder %s39, 2
      %s41 = scalar_select %p40, 0, %s39
      %s42 = ssub.s32 %s29, %s41
      %p43 = scmp.eq.s32.totalorder %s42, 0
      %s45 = sadd.s32 %s44, 1
      %s46 = scalar_select %p43, %s44, %s45
      %p49 = pneg %p43
      %p50 = scmp.eq.s32.totalorder %s22, 3
      %p51 = por %p49, %p50
      %p52 = scmp.ne.s32.totalorder %s44, %s47
      %p53 = scmp.eq.s32.totalorder %s22, 0
      %p54 = por %p52, %p53
      %p55 = scmp.ne.s32.totalorder %s44, %s47
      %p56 = scmp.eq.s32.totalorder %s27, 3
      %p57 = por %p55, %p56
      %p58 = scmp.ne.s32.totalorder %s47, %s48
      %p59 = scmp.eq.s32.totalorder %s27, 0
      %p60 = por %p58, %p59
      %p61 = scmp.ne.s32.totalorder %s47, %s48
      %p62 = scmp.eq.s32.totalorder %s28, 3
      %p63 = por %p61, %p62
      %p65 = scmp.ne.s32.totalorder %s48, %s64
      %p66 = scmp.eq.s32.totalorder %s28, 0
      %p67 = por %p65, %p66
      %s68 = ssub.s32 %s30, %s37
      %p69 = scmp.eq.s32.totalorder %s68, 0
      %s71 = sadd.s32 %s70, 1
      %s72 = scalar_select %p69, %s70, %s71
      %p75 = pneg %p69
      %p76 = scmp.eq.s32.totalorder %s22, 3
      %p77 = por %p75, %p76
      %p78 = scmp.ne.s32.totalorder %s70, %s73
      %p79 = scmp.eq.s32.totalorder %s22, 0
      %p80 = por %p78, %p79
      %p81 = scmp.ne.s32.totalorder %s70, %s73
      %p82 = scmp.eq.s32.totalorder %s27, 3
      %p83 = por %p81, %p82
      %p84 = scmp.ne.s32.totalorder %s73, %s74
      %p85 = scmp.eq.s32.totalorder %s27, 0
      %p86 = por %p84, %p85
      %p87 = scmp.ne.s32.totalorder %s73, %s74
      %p88 = scmp.eq.s32.totalorder %s28, 3
      %p89 = por %p87, %p88
      %p91 = scmp.ne.s32.totalorder %s74, %s90
      %p92 = scmp.eq.s32.totalorder %s28, 0
      %p93 = por %p91, %p92
      %s94 = ssub.s32 %s30, %s37
      %p95 = scmp.eq.s32.totalorder %s94, 0
      %s97 = sadd.s32 %s96, 1
      %s98 = scalar_select %p95, %s96, %s97
      %p101 = pneg %p95
      %p102 = scmp.eq.s32.totalorder %s22, 3
      %p103 = por %p101, %p102
      %p104 = scmp.ne.s32.totalorder %s96, %s99
      %p105 = scmp.eq.s32.totalorder %s22, 0
      %p106 = por %p104, %p105
      %p107 = scmp.ne.s32.totalorder %s96, %s99
      %p108 = scmp.eq.s32.totalorder %s27, 3
      %p109 = por %p107, %p108
      %p110 = scmp.ne.s32.totalorder %s99, %s100
      %p111 = scmp.eq.s32.totalorder %s27, 0
      %p112 = por %p110, %p111
      %p113 = scmp.ne.s32.totalorder %s99, %s100
      %p114 = scmp.eq.s32.totalorder %s28, 3
      %p115 = por %p113, %p114
      %p117 = scmp.ne.s32.totalorder %s100, %s116
      %p118 = scmp.eq.s32.totalorder %s28, 0
      %p119 = por %p117, %p118
      %s120 = ssub.s32 %s30, %s37
      %p121 = scmp.eq.s32.totalorder %s120, 0
      %s123 = sadd.s32 %s122, 1
      %s124 = scalar_select %p121, %s122, %s123
      %p127 = pneg %p121
      %p128 = scmp.eq.s32.totalorder %s22, 3
      %p129 = por %p127, %p128
      %p130 = scmp.ne.s32.totalorder %s122, %s125
      %p131 = scmp.eq.s32.totalorder %s22, 0
      %p132 = por %p130, %p131
      %p133 = scmp.ne.s32.totalorder %s122, %s125
      %p134 = scmp.eq.s32.totalorder %s27, 3
      %p135 = por %p133, %p134
      %p136 = scmp.ne.s32.totalorder %s125, %s126
      %p137 = scmp.eq.s32.totalorder %s27, 0
      %p138 = por %p136, %p137
      %p139 = scmp.ne.s32.totalorder %s125, %s126
      %p140 = scmp.eq.s32.totalorder %s28, 3
      %p141 = por %p139, %p140
      %p143 = scmp.ne.s32.totalorder %s126, %s142
      %p144 = scmp.eq.s32.totalorder %s28, 0
      %p145 = por %p143, %p144
      %s146 = ssub.s32 %s30, %s37
      %p147 = scmp.eq.s32.totalorder %s146, 0
      %s149 = sadd.s32 %s148, 1
      %s150 = scalar_select %p147, %s148, %s149
      %p153 = pneg %p147
      %p154 = scmp.eq.s32.totalorder %s22, 3
      %p155 = por %p153, %p154
      %p156 = scmp.ne.s32.totalorder %s148, %s151
      %p157 = scmp.eq.s32.totalorder %s22, 0
      %p158 = por %p156, %p157
      %p159 = scmp.ne.s32.totalorder %s148, %s151
      %p160 = scmp.eq.s32.totalorder %s27, 3
      %p161 = por %p159, %p160
      %p162 = scmp.ne.s32.totalorder %s151, %s152
      %p163 = scmp.eq.s32.totalorder %s27, 0
      %p164 = por %p162, %p163
      %p165 = scmp.ne.s32.totalorder %s151, %s152
      %p166 = scmp.eq.s32.totalorder %s28, 3
      %p167 = por %p165, %p166
      %p169 = scmp.ne.s32.totalorder %s152, %s168
      %p170 = scmp.eq.s32.totalorder %s28, 0
      %p171 = por %p169, %p170
      %s172 = ssub.s32 %s30, %s37
      %p173 = scmp.eq.s32.totalorder %s172, 0
      %s175 = sadd.s32 %s174, 1
      %s176 = scalar_select %p173, %s174, %s175
      %p179 = pneg %p173
      %p180 = scmp.eq.s32.totalorder %s22, 3
      %p181 = por %p179, %p180
      %p182 = scmp.ne.s32.totalorder %s174, %s177
      %p183 = scmp.eq.s32.totalorder %s22, 0
      %p184 = por %p182, %p183
      %p185 = scmp.ne.s32.totalorder %s174, %s177
      %p186 = scmp.eq.s32.totalorder %s27, 3
      %p187 = por %p185, %p186
      %p188 = scmp.ne.s32.totalorder %s177, %s178
      %p189 = scmp.eq.s32.totalorder %s27, 0
      %p190 = por %p188, %p189
      %p191 = scmp.ne.s32.totalorder %s177, %s178
      %p192 = scmp.eq.s32.totalorder %s28, 3
      %p193 = por %p191, %p192
      %p195 = scmp.ne.s32.totalorder %s178, %s194
      %p196 = scmp.eq.s32.totalorder %s28, 0
      %p197 = por %p195, %p196
      %s198 = ssub.s32 %s30, %s37
      %p199 = scmp.eq.s32.totalorder %s198, 0
      %s201 = sadd.s32 %s200, 1
      %s202 = scalar_select %p199, %s200, %s201
      %p205 = pneg %p199
      %p206 = scmp.eq.s32.totalorder %s22, 3
      %p207 = por %p205, %p206
      %p208 = scmp.ne.s32.totalorder %s200, %s203
      %p209 = scmp.eq.s32.totalorder %s22, 0
      %p210 = por %p208, %p209
      %p211 = scmp.ne.s32.totalorder %s200, %s203
      %p212 = scmp.eq.s32.totalorder %s27, 3
      %p213 = por %p211, %p212
      %p214 = scmp.ne.s32.totalorder %s203, %s204
      %p215 = scmp.eq.s32.totalorder %s27, 0
      %p216 = por %p214, %p215
      %p217 = scmp.ne.s32.totalorder %s203, %s204
      %p218 = scmp.eq.s32.totalorder %s28, 3
      %p219 = por %p217, %p218
      %p221 = scmp.ne.s32.totalorder %s204, %s220
      %p222 = scmp.eq.s32.totalorder %s28, 0
      %p223 = por %p221, %p222
      %s224 = ssub.s32 %s29, %s41
      %p225 = scmp.eq.s32.totalorder %s224, 0
      %s227 = sadd.s32 %s226, 1
      %s228 = scalar_select %p225, %s226, %s227
      %p231 = pneg %p225
      %p232 = scmp.eq.s32.totalorder %s22, 3
      %p233 = por %p231, %p232
      %p234 = scmp.ne.s32.totalorder %s226, %s229
      %p235 = scmp.eq.s32.totalorder %s22, 0
      %p236 = por %p234, %p235
      %p237 = scmp.ne.s32.totalorder %s226, %s229
      %p238 = scmp.eq.s32.totalorder %s27, 3
      %p239 = por %p237, %p238
      %p240 = scmp.ne.s32.totalorder %s229, %s230
      %p241 = scmp.eq.s32.totalorder %s27, 0
      %p242 = por %p240, %p241
      %p243 = scmp.ne.s32.totalorder %s229, %s230
      %p244 = scmp.eq.s32.totalorder %s28, 3
      %p245 = por %p243, %p244
      %p247 = scmp.ne.s32.totalorder %s230, %s246
      %p248 = scmp.eq.s32.totalorder %s28, 0
      %p249 = por %p247, %p248
      %p250 = scmp.le.s32.totalorder 1, %s22
      %p251 = scmp.lt.s32.totalorder %s22, 5
      %p252 = pnand %p250, %p251
      %p253 = pneg %p252
      // Predicated region
      $region9: #{tpu_custom_call.1} parent=5 // pred_check
        _
      $region10: #{tpu_custom_call.1} parent=5 // pred_check_branch
        %255 = sbr.rel (%p252) target = $region12
      $region11: #{tpu_custom_call.1} parent=5 // pred_region
        %s256 = ssub.s32 %s22, 1
      $region12: #{tpu_custom_call.1} parent=5 // pred_fallthru
        _
      %p257 = scmp.lt.s32.totalorder %s22, 4
      // Predicated region
      $region13: #{tpu_custom_call.1} parent=5 // pred_check
        %p258 = pneg %p257
      $region14: #{tpu_custom_call.1} parent=5 // pred_check_branch
        %260 = sbr.rel (%p258) target = $region16
      $region15: #{tpu_custom_call.1} parent=5 // pred_region
        // Predicated region
        $region17: #{tpu_custom_call.1} parent=15 // pred_check
          %p261 = pneg %p54
        $region18: #{tpu_custom_call.1} parent=15 // pred_check_branch
          %263 = sbr.rel (%p261) target = $region20
        $region19: #{tpu_custom_call.1} parent=15 // pred_region
          %s264 = sand.u32 %s44, 1
          %s265 = scalar_lea.sflag [#allocation4], %s264
          %s266 = sand.u32 %s44, 1
          %s267 = smul.addr %s266, 16
          %s268 = scalar_lea.vmem [#allocation3], %s267
          %s269 = smul.u32 2, %s29
          %s271 = ssub.s32 256, 256
          %272 = vsyncadd %s265, %s271
          %s273 = smul.addr %s269, 128
          %s274 = scalar_lea.hbm %s0, %s273
          %s275 = sshll.u32 %s268, 4
          %s276 = int_to_ptr.vmem [resolvable:$true] %s275
          %281 = dma.hbm_to_vmem [thread:$0]  %s274, 256, %s276, %s265, 128, 128, 8
        $region20: #{tpu_custom_call.1} parent=15 // pred_fallthru
          _
        // Predicated region
        $region21: #{tpu_custom_call.1} parent=15 // pred_check
          %p282 = pneg %p80
        $region22: #{tpu_custom_call.1} parent=15 // pred_check_branch
          %284 = sbr.rel (%p282) target = $region24
        $region23: #{tpu_custom_call.1} parent=15 // pred_region
          %s285 = sand.u32 %s22, 1
          %s286 = scalar_lea.sflag [#allocation7], %s285
          %s287 = sand.u32 %s70, 1
          %s288 = smul.addr %s287, 128
          %s289 = scalar_lea.vmem [#allocation6], %s288
          %s291 = ssub.s32 2048, 2048
          %292 = vsyncadd %s286, %s291
          %s293 = smul.addr %s30, 32
          %s294 = smul.addr %s293, 64
          %s295 = scalar_lea.hbm %s1, %s294
          %s296 = sshll.u32 %s289, 4
          %s297 = int_to_ptr.vmem [resolvable:$true] %s296
          %302 = dma.hbm_to_vmem [thread:$0]  %s295, 2048, %s297, %s286, 128, 128, 8
        $region24: #{tpu_custom_call.1} parent=15 // pred_fallthru
          _
        // Predicated region
        $region25: #{tpu_custom_call.1} parent=15 // pred_check
          %p303 = pneg %p106
        $region26: #{tpu_custom_call.1} parent=15 // pred_check_branch
          %305 = sbr.rel (%p303) target = $region28
        $region27: #{tpu_custom_call.1} parent=15 // pred_region
          %p306 = scmp.lt.s32.totalorder %s30, 1
          %s307 = scalar_select %p306, %s30, 1
          %s308 = smul.addr %s307, 2
          %s309 = scalar_lea.vmem %s2, %s308
        $region28: #{tpu_custom_call.1} parent=15 // pred_fallthru
          _
        // Predicated region
        $region29: #{tpu_custom_call.1} parent=15 // pred_check
          %p310 = pneg %p132
        $region30: #{tpu_custom_call.1} parent=15 // pred_check_branch
          %312 = sbr.rel (%p310) target = $region32
        $region31: #{tpu_custom_call.1} parent=15 // pred_region
          %s313 = sand.u32 %s22, 1
          %s314 = scalar_lea.sflag [#allocation7], %s313
          %s315 = sand.u32 %s122, 1
          %s316 = smul.addr %s315, 128
          %s317 = scalar_lea.vmem [#allocation8], %s316
          %s319 = ssub.s32 2048, 2048
          %320 = vsyncadd %s314, %s319
          %s321 = smul.addr %s30, 32
          %s322 = smul.addr %s321, 64
          %s323 = scalar_lea.hbm %s3, %s322
          %s324 = sshll.u32 %s317, 4
          %s325 = int_to_ptr.vmem [resolvable:$true] %s324
          %330 = dma.hbm_to_vmem [thread:$0]  %s323, 2048, %s325, %s314, 64, 64, 4
        $region32: #{tpu_custom_call.1} parent=15 // pred_fallthru
          _
        // Predicated region
        $region33: #{tpu_custom_call.1} parent=15 // pred_check
          %p331 = pneg %p158
        $region34: #{tpu_custom_call.1} parent=15 // pred_check_branch
          %333 = sbr.rel (%p331) target = $region36
        $region35: #{tpu_custom_call.1} parent=15 // pred_region
          %p334 = scmp.lt.s32.totalorder %s30, 1
          %s335 = scalar_select %p334, %s30, 1
          %s336 = scalar_lea.vmem %s4, %s335
        $region36: #{tpu_custom_call.1} parent=15 // pred_fallthru
          _
        // Predicated region
        $region37: #{tpu_custom_call.1} parent=15 // pred_check
          %p337 = pneg %p184
        $region38: #{tpu_custom_call.1} parent=15 // pred_check_branch
          %339 = sbr.rel (%p337) target = $region40
        $region39: #{tpu_custom_call.1} parent=15 // pred_region
          %p340 = scmp.lt.s32.totalorder %s30, 1
          %s341 = scalar_select %p340, %s30, 1
          %s342 = scalar_lea.vmem %s5, %s341
        $region40: #{tpu_custom_call.1} parent=15 // pred_fallthru
          _
        // Predicated region
        $region41: #{tpu_custom_call.1} parent=15 // pred_check
          %p343 = pneg %p210
        $region42: #{tpu_custom_call.1} parent=15 // pred_check_branch
          %345 = sbr.rel (%p343) target = $region44
        $region43: #{tpu_custom_call.1} parent=15 // pred_region
          %p346 = scmp.lt.s32.totalorder %s30, 1
          %s347 = scalar_select %p346, %s30, 1
          %s348 = scalar_lea.vmem %s6, %s347
        $region44: #{tpu_custom_call.1} parent=15 // pred_fallthru
          _
      $region16: #{tpu_custom_call.1} parent=5 // pred_fallthru
        _
      %p349 = scmp.le.s32.totalorder 1, %s22
      %p350 = scmp.lt.s32.totalorder %s22, 5
      %p351 = pnand %p349, %p350
      %p352 = pneg %p351
      // Predicated region
      $region45: #{tpu_custom_call.1} parent=5 // pred_check
        _
      $region46: #{tpu_custom_call.1} parent=5 // pred_check_branch
        %354 = sbr.rel (%p351) target = $region48
      $region47: #{tpu_custom_call.1} parent=5 // pred_region
        %s355 = ssub.s32 %s22, 1
        %s356 = sand.u32 %s47, 1
        %s357 = scalar_lea.sflag [#allocation4], %s356
        %s358 = sand.u32 %s47, 1
        %s359 = smul.addr %s358, 16
        %s360 = scalar_lea.vmem [#allocation3], %s359
        // Predicated region
        $region49: #{tpu_custom_call.1} parent=47 // pred_check
          %p361 = pneg %p60
        $region50: #{tpu_custom_call.1} parent=47 // pred_check_branch
          %363 = sbr.rel (%p361) target = $region52
        $region51: #{tpu_custom_call.1} parent=47 // pred_region
          %364 = dma.done %s357, 256
        $region52: #{tpu_custom_call.1} parent=47 // pred_fallthru
          _
        %s365 = sand.u32 %s27, 1
        %s366 = scalar_lea.sflag [#allocation7], %s365
        %s367 = sand.u32 %s73, 1
        %s368 = smul.addr %s367, 128
        %s369 = scalar_lea.vmem [#allocation6], %s368
        // Predicated region
        $region53: #{tpu_custom_call.1} parent=47 // pred_check
          %p370 = pneg %p86
        $region54: #{tpu_custom_call.1} parent=47 // pred_check_branch
          %372 = sbr.rel (%p370) target = $region56
        $region55: #{tpu_custom_call.1} parent=47 // pred_region
          %373 = dma.done %s366, 2048
        $region56: #{tpu_custom_call.1} parent=47 // pred_fallthru
          _
        %s374 = sand.u32 %s27, 1
        %s375 = scalar_lea.sflag [#allocation7], %s374
        %s376 = sand.u32 %s125, 1
        %s377 = smul.addr %s376, 128
        %s378 = scalar_lea.vmem [#allocation8], %s377
        // Predicated region
        $region57: #{tpu_custom_call.1} parent=47 // pred_check
          %p379 = pneg %p138
        $region58: #{tpu_custom_call.1} parent=47 // pred_check_branch
          %381 = sbr.rel (%p379) target = $region60
        $region59: #{tpu_custom_call.1} parent=47 // pred_region
          %382 = dma.done %s375, 2048
        $region60: #{tpu_custom_call.1} parent=47 // pred_fallthru
          _
        %s383 = sand.u32 %s47, 1
        %s384 = scalar_lea.sflag [#allocation4], %s383
        %s385 = sand.u32 %s47, 1
        %s386 = smul.addr %s385, 16
        %s387 = scalar_lea.vmem [#allocation3], %s386
        %p388 = pneg %p60
        %p389 = pneg %p57
        %s390 = sand.u32 %s27, 1
        %s391 = scalar_lea.sflag [#allocation7], %s390
        %s392 = sand.u32 %s73, 1
        %s393 = smul.addr %s392, 128
        %s394 = scalar_lea.vmem [#allocation6], %s393
        %p395 = pneg %p86
        %p396 = pneg %p83
        %p397 = scmp.lt.s32.totalorder %s32, 1
        %s398 = scalar_select %p397, %s32, 1
        %s399 = smul.addr %s398, 2
        %s400 = scalar_lea.vmem %s2, %s399
        %p401 = pneg %p112
        %p402 = pneg %p109
        %s403 = sand.u32 %s27, 1
        %s404 = scalar_lea.sflag [#allocation7], %s403
        %s405 = sand.u32 %s125, 1
        %s406 = smul.addr %s405, 128
        %s407 = scalar_lea.vmem [#allocation8], %s406
        %p408 = pneg %p138
        %p409 = pneg %p135
        %p410 = scmp.lt.s32.totalorder %s32, 1
        %s411 = scalar_select %p410, %s32, 1
        %s412 = scalar_lea.vmem %s4, %s411
        %p413 = pneg %p164
        %p414 = pneg %p161
        %p415 = scmp.lt.s32.totalorder %s32, 1
        %s416 = scalar_select %p415, %s32, 1
        %s417 = scalar_lea.vmem %s5, %s416
        %p418 = pneg %p190
        %p419 = pneg %p187
        %p420 = scmp.lt.s32.totalorder %s32, 1
        %s421 = scalar_select %p420, %s32, 1
        %s422 = scalar_lea.vmem %s6, %s421
        %p423 = pneg %p216
        %p424 = pneg %p213
        %p425 = pneg %p242
        %p426 = pneg %p239
        %s427 = sand.u32 %s229, 1
        %s428 = scalar_lea.sflag [#allocation5], %s427
        %s429 = sand.u32 %s229, 1
        %s430 = smul.addr %s429, 16
        %s431 = scalar_lea.vmem [#allocation9], %s430
        %s432 = smul.u32 2, %s31
        %p433 = scmp.lt.s32.totalorder %s32, 1
        %s434 = scalar_select %p433, %s32, 1
        %s435 = smul.addr %s434, 2
        %s436 = scalar_lea.vmem %s2, %s435
        %p437 = scmp.lt.s32.totalorder %s32, 1
        %s438 = scalar_select %p437, %s32, 1
        %s439 = scalar_lea.vmem %s4, %s438
        %p440 = scmp.lt.s32.totalorder %s32, 1
        %s441 = scalar_select %p440, %s32, 1
        %s442 = scalar_lea.vmem %s5, %s441
        %p443 = scmp.lt.s32.totalorder %s32, 1
        %s444 = scalar_select %p443, %s32, 1
        %s445 = scalar_lea.vmem %s6, %s444
        %s446 = smul.u32 2, %s31
        %p448 = scmp.eq.s32.totalorder %s32, 0
        // Predicated region
        $region61: #{tpu_custom_call.1} parent=47 // pred_check
          %p449 = pneg %p448
        $region62: #{tpu_custom_call.1} parent=47 // pred_check_branch
          %451 = sbr.rel (%p449) target = $region64
        $region63: #{tpu_custom_call.1} parent=47 // pred_region
          %v452 = vld [vmem:[%s360] sm:$0xff]
          %v453 = vld [vmem:[%s360 + $0x8] sm:$0xff]
          %454 = vst [vmem:[#allocation2] sm:$0xff] %v452
          %455 = vst [vmem:[#allocation2 + $0x8] sm:$0xff] %v453
        $region64: #{tpu_custom_call.1} parent=47 // pred_fallthru
          _
        %v456 = vld [vmem:[#allocation2] sm:$0xff]
        %v457 = vld [vmem:[#allocation2 + $0x8] sm:$0xff]
        %v458 = vpack.c.bf16 %v457, %v456
        %v459 = vld [vmem:[%s369] sm:$0xf]
        %v460 = vld [vmem:[%s369 + $0x8] sm:$0xf]
        %v461 = vld [vmem:[%s369 + $0x10] sm:$0xf]
        %v462 = vld [vmem:[%s369 + $0x18] sm:$0xf]
        %v463 = vld [vmem:[%s369 + $0x20] sm:$0xf]
        %v464 = vld [vmem:[%s369 + $0x28] sm:$0xf]
        %v465 = vld [vmem:[%s369 + $0x30] sm:$0xf]
        %v466 = vld [vmem:[%s369 + $0x38] sm:$0xf]
        %v467 = vld [vmem:[%s369 + $0x40] sm:$0xf]
        %v468 = vld [vmem:[%s369 + $0x48] sm:$0xf]
        %v469 = vld [vmem:[%s369 + $0x50] sm:$0xf]
        %v470 = vld [vmem:[%s369 + $0x58] sm:$0xf]
        %v471 = vld [vmem:[%s369 + $0x60] sm:$0xf]
        %v472 = vld [vmem:[%s369 + $0x68] sm:$0xf]
        %v473 = vld [vmem:[%s369 + $0x70] sm:$0xf]
        %v474 = vld [vmem:[%s369 + $0x78] sm:$0xf]
        %v475 = vld [vmem:[%s436] sm:$0x1]
        %v477 = vlaneseq
        %v478 = vshrl.u32 %v477, 7
        %v479 = vsub.s32 0, %v478
        %v480 = vrot.slane %v475, %v479
        %v498 = vunpack.c.l.b16 %v459
        %v499 = vunpack.c.l.b16 %v460
        %v500 = vunpack.c.l.b16 %v461
        %v501 = vunpack.c.l.b16 %v462
        %v502 = vunpack.c.l.b16 %v463
        %v503 = vunpack.c.l.b16 %v464
        %v504 = vunpack.c.l.b16 %v465
        %v505 = vunpack.c.l.b16 %v466
        %v506 = vunpack.c.l.b16 %v467
        %v507 = vunpack.c.l.b16 %v468
        %v508 = vunpack.c.l.b16 %v469
        %v509 = vunpack.c.l.b16 %v470
        %v510 = vunpack.c.l.b16 %v471
        %v511 = vunpack.c.l.b16 %v472
        %v512 = vunpack.c.l.b16 %v473
        %v513 = vunpack.c.l.b16 %v474
        %v514 = vpack.c.b16 %v499, %v498
        %v515 = vpack.c.b16 %v501, %v500
        %v516 = vpack.c.b16 %v503, %v502
        %v517 = vpack.c.b16 %v505, %v504
        %v518 = vpack.c.b16 %v507, %v506
        %v519 = vpack.c.b16 %v509, %v508
        %v520 = vpack.c.b16 %v511, %v510
        %v521 = vpack.c.b16 %v513, %v512
        %530 = vmatprep.subr.bf16.mxu0 0
        %531 = vmatpush1.bf16.msra.mxu0 %v514
        %532 = vmatprep.subr.bf16.mxu0 0
        %533 = vmatpush1.bf16.msra.mxu0 %v515
        %534 = vmatprep.subr.bf16.mxu0 0
        %535 = vmatpush1.bf16.msra.mxu0 %v516
        %536 = vmatprep.subr.bf16.mxu0 0
        %537 = vmatpush1.bf16.msra.mxu0 %v517
        %538 = vmatprep.subr.bf16.mxu0 0
        %539 = vmatpush1.bf16.msra.mxu0 %v518
        %540 = vmatprep.subr.bf16.mxu0 0
        %541 = vmatpush1.bf16.msra.mxu0 %v519
        %542 = vmatprep.subr.bf16.mxu0 0
        %543 = vmatpush1.bf16.msra.mxu0 %v520
        %544 = vmatprep.subr.bf16.mxu0 0
        %545 = vmatpush1.bf16.msra.mxu0 %v521
        %546 = vmatprep.subr.bf16.mxu0 0
        %547 = vmatpush1.bf16.msra.mxu0 0
        %548 = vmatprep.subr.bf16.mxu0 0
        %549 = vmatpush1.bf16.msra.mxu0 0
        %550 = vmatprep.subr.bf16.mxu0 0
        %551 = vmatpush1.bf16.msra.mxu0 0
        %552 = vmatprep.subr.bf16.mxu0 0
        %553 = vmatpush1.bf16.msra.mxu0 0
        %554 = vmatprep.subr.bf16.mxu0 0
        %555 = vmatpush1.bf16.msra.mxu0 0
        %556 = vmatprep.subr.bf16.mxu0 0
        %557 = vmatpush1.bf16.msra.mxu0 0
        %558 = vmatprep.subr.bf16.mxu0 0
        %559 = vmatpush1.bf16.msra.mxu0 0
        %560 = vmatprep.subr.bf16.mxu0 0
        %561 = vmatpush1.bf16.msra.mxu0 0
        %562 = vmatprep.mubr.bf16.mxu0 0
        %563 = vmatmul.mubr.bf16.gmra.mrb[0].mxu0 %v458
        %v564 = vpop.f32.mrb[0].mxu0
        %v565 = vadd.f32 %v480, %v564
        %v566 = vpop.f32.mrb[0].mxu0
        %v567 = vpop.f32.mrb[0].mxu0
        %v568 = vadd.f32 %v480, %v567
        %v569 = vpop.f32.mrb[0].mxu0
        %570 = vdwg.mxu0
        %v571 = vmax.f32 %v565, 0.0
        %v572 = vmax.f32 %v568, 0.0
        %v573 = vld [vmem:[%s378] sm:$0xf]
        %v574 = vld [vmem:[%s378 + $0x4] sm:$0xf]
        %v575 = vld [vmem:[%s378 + $0x8] sm:$0xf]
        %v576 = vld [vmem:[%s378 + $0xc] sm:$0xf]
        %v577 = vld [vmem:[%s378 + $0x10] sm:$0xf]
        %v578 = vld [vmem:[%s378 + $0x14] sm:$0xf]
        %v579 = vld [vmem:[%s378 + $0x18] sm:$0xf]
        %v580 = vld [vmem:[%s378 + $0x1c] sm:$0xf]
        %v581 = vld [vmem:[%s378 + $0x20] sm:$0xf]
        %v582 = vld [vmem:[%s378 + $0x24] sm:$0xf]
        %v583 = vld [vmem:[%s378 + $0x28] sm:$0xf]
        %v584 = vld [vmem:[%s378 + $0x2c] sm:$0xf]
        %v585 = vld [vmem:[%s378 + $0x30] sm:$0xf]
        %v586 = vld [vmem:[%s378 + $0x34] sm:$0xf]
        %v587 = vld [vmem:[%s378 + $0x38] sm:$0xf]
        %v588 = vld [vmem:[%s378 + $0x3c] sm:$0xf]
        %v589 = vpack.c.bf16 %v572, %v571
        %v590 = vld [vmem:[%s369 + $0x4] sm:$0xf]
        %v591 = vld [vmem:[%s369 + $0xc] sm:$0xf]
        %v592 = vld [vmem:[%s369 + $0x14] sm:$0xf]
        %v593 = vld [vmem:[%s369 + $0x1c] sm:$0xf]
        %v594 = vld [vmem:[%s369 + $0x24] sm:$0xf]
        %v595 = vld [vmem:[%s369 + $0x2c] sm:$0xf]
        %v596 = vld [vmem:[%s369 + $0x34] sm:$0xf]
        %v597 = vld [vmem:[%s369 + $0x3c] sm:$0xf]
        %v598 = vld [vmem:[%s369 + $0x44] sm:$0xf]
        %v599 = vld [vmem:[%s369 + $0x4c] sm:$0xf]
        %v600 = vld [vmem:[%s369 + $0x54] sm:$0xf]
        %v601 = vld [vmem:[%s369 + $0x5c] sm:$0xf]
        %v602 = vld [vmem:[%s369 + $0x64] sm:$0xf]
        %v603 = vld [vmem:[%s369 + $0x6c] sm:$0xf]
        %v604 = vld [vmem:[%s369 + $0x74] sm:$0xf]
        %v605 = vld [vmem:[%s369 + $0x7c] sm:$0xf]
        %v606 = vld [vmem:[%s436 + $0x1] sm:$0x1]
        %v608 = vlaneseq
        %v609 = vshrl.u32 %v608, 7
        %v610 = vsub.s32 0, %v609
        %v611 = vrot.slane %v606, %v610
        %v629 = vunpack.c.l.b16 %v590
        %v630 = vunpack.c.l.b16 %v591
        %v631 = vunpack.c.l.b16 %v592
        %v632 = vunpack.c.l.b16 %v593
        %v633 = vunpack.c.l.b16 %v594
        %v634 = vunpack.c.l.b16 %v595
        %v635 = vunpack.c.l.b16 %v596
        %v636 = vunpack.c.l.b16 %v597
        %v637 = vunpack.c.l.b16 %v598
        %v638 = vunpack.c.l.b16 %v599
        %v639 = vunpack.c.l.b16 %v600
        %v640 = vunpack.c.l.b16 %v601
        %v641 = vunpack.c.l.b16 %v602
        %v642 = vunpack.c.l.b16 %v603
        %v643 = vunpack.c.l.b16 %v604
        %v644 = vunpack.c.l.b16 %v605
        %v645 = vpack.c.b16 %v630, %v629
        %v646 = vpack.c.b16 %v632, %v631
        %v647 = vpack.c.b16 %v634, %v633
        %v648 = vpack.c.b16 %v636, %v635
        %v649 = vpack.c.b16 %v638, %v637
        %v650 = vpack.c.b16 %v640, %v639
        %v651 = vpack.c.b16 %v642, %v641
        %v652 = vpack.c.b16 %v644, %v643
        %661 = vmatprep.subr.bf16.mxu0 0
        %662 = vmatpush1.bf16.msra.mxu0 %v645
        %663 = vmatprep.subr.bf16.mxu0 0
        %664 = vmatpush1.bf16.msra.mxu0 %v646
        %665 = vmatprep.subr.bf16.mxu0 0
        %666 = vmatpush1.bf16.msra.mxu0 %v647
        %667 = vmatprep.subr.bf16.mxu0 0
        %668 = vmatpush1.bf16.msra.mxu0 %v648
        %669 = vmatprep.subr.bf16.mxu0 0
        %670 = vmatpush1.bf16.msra.mxu0 %v649
        %671 = vmatprep.subr.bf16.mxu0 0
        %672 = vmatpush1.bf16.msra.mxu0 %v650
        %673 = vmatprep.subr.bf16.mxu0 0
        %674 = vmatpush1.bf16.msra.mxu0 %v651
        %675 = vmatprep.subr.bf16.mxu0 0
        %676 = vmatpush1.bf16.msra.mxu0 %v652
        %677 = vmatprep.subr.bf16.mxu0 0
        %678 = vmatpush1.bf16.msra.mxu0 0
        %679 = vmatprep.subr.bf16.mxu0 0
        %680 = vmatpush1.bf16.msra.mxu0 0
        %681 = vmatprep.subr.bf16.mxu0 0
        %682 = vmatpush1.bf16.msra.mxu0 0
        %683 = vmatprep.subr.bf16.mxu0 0
        %684 = vmatpush1.bf16.msra.mxu0 0
        %685 = vmatprep.subr.bf16.mxu0 0
        %686 = vmatpush1.bf16.msra.mxu0 0
        %687 = vmatprep.subr.bf16.mxu0 0
        %688 = vmatpush1.bf16.msra.mxu0 0
        %689 = vmatprep.subr.bf16.mxu0 0
        %690 = vmatpush1.bf16.msra.mxu0 0
        %691 = vmatprep.subr.bf16.mxu0 0
        %692 = vmatpush1.bf16.msra.mxu0 0
        %693 = vmatprep.mubr.bf16.mxu0 0
        %694 = vmatmul.mubr.bf16.gmra.mrb[0].mxu0 %v458
        %v695 = vpop.f32.mrb[0].mxu0
        %v696 = vadd.f32 %v611, %v695
        %v697 = vpop.f32.mrb[0].mxu0
        %v698 = vpop.f32.mrb[0].mxu0
        %v699 = vadd.f32 %v611, %v698
        %v700 = vpop.f32.mrb[0].mxu0
        %701 = vdwg.mxu0
        %v702 = vmax.f32 %v696, 0.0
        %v703 = vmax.f32 %v699, 0.0
        %v704 = vld [vmem:[%s378 + $0x40] sm:$0xf]
        %v705 = vld [vmem:[%s378 + $0x44] sm:$0xf]
        %v706 = vld [vmem:[%s378 + $0x48] sm:$0xf]
        %v707 = vld [vmem:[%s378 + $0x4c] sm:$0xf]
        %v708 = vld [vmem:[%s378 + $0x50] sm:$0xf]
        %v709 = vld [vmem:[%s378 + $0x54] sm:$0xf]
        %v710 = vld [vmem:[%s378 + $0x58] sm:$0xf]
        %v711 = vld [vmem:[%s378 + $0x5c] sm:$0xf]
        %v712 = vld [vmem:[%s378 + $0x60] sm:$0xf]
        %v713 = vld [vmem:[%s378 + $0x64] sm:$0xf]
        %v714 = vld [vmem:[%s378 + $0x68] sm:$0xf]
        %v715 = vld [vmem:[%s378 + $0x6c] sm:$0xf]
        %v716 = vld [vmem:[%s378 + $0x70] sm:$0xf]
        %v717 = vld [vmem:[%s378 + $0x74] sm:$0xf]
        %v718 = vld [vmem:[%s378 + $0x78] sm:$0xf]
        %v719 = vld [vmem:[%s378 + $0x7c] sm:$0xf]
        %v720 = vpack.c.bf16 %v703, %v702
        %v737 = vunpack.c.l.b16 %v704
        %v738 = vunpack.c.l.b16 %v705
        %v739 = vunpack.c.l.b16 %v706
        %v740 = vunpack.c.l.b16 %v707
        %v741 = vunpack.c.l.b16 %v708
        %v742 = vunpack.c.l.b16 %v709
        %v743 = vunpack.c.l.b16 %v710
        %v744 = vunpack.c.l.b16 %v711
        %v745 = vunpack.c.l.b16 %v712
        %v746 = vunpack.c.l.b16 %v713
        %v747 = vunpack.c.l.b16 %v714
        %v748 = vunpack.c.l.b16 %v715
        %v749 = vunpack.c.l.b16 %v716
        %v750 = vunpack.c.l.b16 %v717
        %v751 = vunpack.c.l.b16 %v718
        %v752 = vunpack.c.l.b16 %v719
        %v753 = vpack.c.b16 %v738, %v737
        %v754 = vpack.c.b16 %v740, %v739
        %v755 = vpack.c.b16 %v742, %v741
        %v756 = vpack.c.b16 %v744, %v743
        %v757 = vpack.c.b16 %v746, %v745
        %v758 = vpack.c.b16 %v748, %v747
        %v759 = vpack.c.b16 %v750, %v749
        %v760 = vpack.c.b16 %v752, %v751
        %769 = vmatprep.subr.bf16.mxu0 0
        %770 = vmatpush1.bf16.msra.mxu0 %v753
        %771 = vmatprep.subr.bf16.mxu0 0
        %772 = vmatpush1.bf16.msra.mxu0 %v754
        %773 = vmatprep.subr.bf16.mxu0 0
        %774 = vmatpush1.bf16.msra.mxu0 %v755
        %775 = vmatprep.subr.bf16.mxu0 0
        %776 = vmatpush1.bf16.msra.mxu0 %v756
        %777 = vmatprep.subr.bf16.mxu0 0
        %778 = vmatpush1.bf16.msra.mxu0 %v757
        %779 = vmatprep.subr.bf16.mxu0 0
        %780 = vmatpush1.bf16.msra.mxu0 %v758
        %781 = vmatprep.subr.bf16.mxu0 0
        %782 = vmatpush1.bf16.msra.mxu0 %v759
        %783 = vmatprep.subr.bf16.mxu0 0
        %784 = vmatpush1.bf16.msra.mxu0 %v760
        %785 = vmatprep.subr.bf16.mxu0 0
        %786 = vmatpush1.bf16.msra.mxu0 0
        %787 = vmatprep.subr.bf16.mxu0 0
        %788 = vmatpush1.bf16.msra.mxu0 0
        %789 = vmatprep.subr.bf16.mxu0 0
        %790 = vmatpush1.bf16.msra.mxu0 0
        %791 = vmatprep.subr.bf16.mxu0 0
        %792 = vmatpush1.bf16.msra.mxu0 0
        %793 = vmatprep.subr.bf16.mxu0 0
        %794 = vmatpush1.bf16.msra.mxu0 0
        %795 = vmatprep.subr.bf16.mxu0 0
        %796 = vmatpush1.bf16.msra.mxu0 0
        %797 = vmatprep.subr.bf16.mxu0 0
        %798 = vmatpush1.bf16.msra.mxu0 0
        %799 = vmatprep.subr.bf16.mxu0 0
        %800 = vmatpush1.bf16.msra.mxu0 0
        %801 = vmatprep.mubr.bf16.mxu0 0
        %802 = vmatmul.mubr.bf16.gmra.mrb[0].mxu0 %v720
        %v803 = vpop.f32.mrb[0].mxu0
        %v804 = vadd.f32 0.0, %v803
        %v805 = vpop.f32.mrb[0].mxu0
        %v806 = vpop.f32.mrb[0].mxu0
        %v807 = vadd.f32 0.0, %v806
        %v808 = vpop.f32.mrb[0].mxu0
        %809 = vdwg.mxu0
        %v826 = vunpack.c.l.b16 %v573
        %v827 = vunpack.c.l.b16 %v574
        %v828 = vunpack.c.l.b16 %v575
        %v829 = vunpack.c.l.b16 %v576
        %v830 = vunpack.c.l.b16 %v577
        %v831 = vunpack.c.l.b16 %v578
        %v832 = vunpack.c.l.b16 %v579
        %v833 = vunpack.c.l.b16 %v580
        %v834 = vunpack.c.l.b16 %v581
        %v835 = vunpack.c.l.b16 %v582
        %v836 = vunpack.c.l.b16 %v583
        %v837 = vunpack.c.l.b16 %v584
        %v838 = vunpack.c.l.b16 %v585
        %v839 = vunpack.c.l.b16 %v586
        %v840 = vunpack.c.l.b16 %v587
        %v841 = vunpack.c.l.b16 %v588
        %v842 = vpack.c.b16 %v827, %v826
        %v843 = vpack.c.b16 %v829, %v828
        %v844 = vpack.c.b16 %v831, %v830
        %v845 = vpack.c.b16 %v833, %v832
        %v846 = vpack.c.b16 %v835, %v834
        %v847 = vpack.c.b16 %v837, %v836
        %v848 = vpack.c.b16 %v839, %v838
        %v849 = vpack.c.b16 %v841, %v840
        %858 = vmatprep.subr.bf16.mxu0 0
        %859 = vmatpush1.bf16.msra.mxu0 %v842
        %860 = vmatprep.subr.bf16.mxu0 0
        %861 = vmatpush1.bf16.msra.mxu0 %v843
        %862 = vmatprep.subr.bf16.mxu0 0
        %863 = vmatpush1.bf16.msra.mxu0 %v844
        %864 = vmatprep.subr.bf16.mxu0 0
        %865 = vmatpush1.bf16.msra.mxu0 %v845
        %866 = vmatprep.subr.bf16.mxu0 0
        %867 = vmatpush1.bf16.msra.mxu0 %v846
        %868 = vmatprep.subr.bf16.mxu0 0
        %869 = vmatpush1.bf16.msra.mxu0 %v847
        %870 = vmatprep.subr.bf16.mxu0 0
        %871 = vmatpush1.bf16.msra.mxu0 %v848
        %872 = vmatprep.subr.bf16.mxu0 0
        %873 = vmatpush1.bf16.msra.mxu0 %v849
        %874 = vmatprep.subr.bf16.mxu0 0
        %875 = vmatpush1.bf16.msra.mxu0 0
        %876 = vmatprep.subr.bf16.mxu0 0
        %877 = vmatpush1.bf16.msra.mxu0 0
        %878 = vmatprep.subr.bf16.mxu0 0
        %879 = vmatpush1.bf16.msra.mxu0 0
        %880 = vmatprep.subr.bf16.mxu0 0
        %881 = vmatpush1.bf16.msra.mxu0 0
        %882 = vmatprep.subr.bf16.mxu0 0
        %883 = vmatpush1.bf16.msra.mxu0 0
        %884 = vmatprep.subr.bf16.mxu0 0
        %885 = vmatpush1.bf16.msra.mxu0 0
        %886 = vmatprep.subr.bf16.mxu0 0
        %887 = vmatpush1.bf16.msra.mxu0 0
        %888 = vmatprep.subr.bf16.mxu0 0
        %889 = vmatpush1.bf16.msra.mxu0 0
        %890 = vmatprep.mubr.bf16.mxu0 0
        %891 = vmatmul.mubr.bf16.gmra.mrb[0].mxu0 %v589
        %v892 = vpop.f32.mrb[0].mxu0
        %v893 = vadd.f32 %v804, %v892
        %v894 = vpop.f32.mrb[0].mxu0
        %v895 = vpop.f32.mrb[0].mxu0
        %v896 = vadd.f32 %v807, %v895
        %v897 = vpop.f32.mrb[0].mxu0
        %898 = vdwg.mxu0
        %v899 = vld [vmem:[%s439] sm:$0x1]
        %v901 = vlaneseq
        %v902 = vshrl.u32 %v901, 7
        %v903 = vsub.s32 0, %v902
        %v904 = vrot.slane %v899, %v903
        %v906 = vadd.f32 %v893, %v904
        %v907 = vadd.f32 %v896, %v904
        %v908 = vadd.f32 %v456, %v906
        %v909 = vadd.f32 %v457, %v907
        %910 = vadd.xlane.f32.xlu0 %v908
        %v911 = vpop.xlane.xlu0 %910
        %912 = vadd.xlane.f32.xlu0 %v909
        %v913 = vpop.xlane.xlu0 %912
        %v914 = vmul.f32 %v908, %v908
        %v915 = vmul.f32 %v909, %v909
        %916 = vadd.xlane.f32.xlu0 %v914
        %v917 = vpop.xlane.xlu0 %916
        %918 = vadd.xlane.f32.xlu0 %v915
        %v919 = vpop.xlane.xlu0 %918
        %v920 = vmul.f32 %v911, 0.0078125
        %v921 = vmul.f32 %v913, 0.0078125
        %v922 = vmul.f32 %v917, 0.0078125
        %v923 = vmul.f32 %v919, 0.0078125
        %v924 = vmul.f32 %v920, %v920
        %v925 = vmul.f32 %v921, %v921
        %v926 = vsub.f32 %v922, %v924
        %v927 = vsub.f32 %v923, %v925
        %v928 = vmax.f32 %v926, 0.0
        %v929 = vmax.f32 %v927, 0.0
        %v930 = vsub.f32 %v908, %v920
        %v931 = vsub.f32 %v909, %v921
        %v932 = vadd.f32 %v928, 1e-05
        %v933 = vadd.f32 %v929, 1e-05
        %v934 = vrsqrt.pop %v932
        %v935 = vrsqrt.pop %v933
        %v936 = vmul.f32 %v930, %v934
        %v937 = vmul.f32 %v931, %v935
        %v938 = vld [vmem:[%s442] sm:$0x1]
        %v940 = vlaneseq
        %v941 = vshrl.u32 %v940, 7
        %v942 = vsub.s32 0, %v941
        %v943 = vrot.slane %v938, %v942
        %v945 = vmul.f32 %v936, %v943
        %v946 = vmul.f32 %v937, %v943
        %v947 = vld [vmem:[%s445] sm:$0x1]
        %v949 = vlaneseq
        %v950 = vshrl.u32 %v949, 7
        %v951 = vsub.s32 0, %v950
        %v952 = vrot.slane %v947, %v951
        %v954 = vadd.f32 %v945, %v952
        %v955 = vadd.f32 %v946, %v952
        %956 = vst [vmem:[#allocation2] sm:$0xff] %v954
        %957 = vst [vmem:[#allocation2 + $0x8] sm:$0xff] %v955
        %p958 = scmp.eq.s32.totalorder %s32, 1
        // Predicated region
        $region65: #{tpu_custom_call.1} parent=47 // pred_check
          %p959 = pneg %p958
        $region66: #{tpu_custom_call.1} parent=47 // pred_check_branch
          %961 = sbr.rel (%p959) target = $region68
        $region67: #{tpu_custom_call.1} parent=47 // pred_region
          %962 = vst [vmem:[%s431] sm:$0xff] %v954
          %963 = vst [vmem:[%s431 + $0x8] sm:$0xff] %v955
        $region68: #{tpu_custom_call.1} parent=47 // pred_fallthru
          _
        %s964 = sand.u32 %s229, 1
        %s965 = scalar_lea.sflag [#allocation5], %s964
        %s966 = sand.u32 %s229, 1
        %s967 = smul.addr %s966, 16
        %s968 = scalar_lea.vmem [#allocation9], %s967
        // Predicated region
        $region69: #{tpu_custom_call.1} parent=47 // pred_check
          %p969 = pneg %p239
        $region70: #{tpu_custom_call.1} parent=47 // pred_check_branch
          %971 = sbr.rel (%p969) target = $region72
        $region71: #{tpu_custom_call.1} parent=47 // pred_region
          %s972 = smul.u32 2, %s31
          %s974 = ssub.s32 256, 256
          %975 = vsyncadd %s965, %s974
          %s976 = smul.addr %s972, 128
          %s977 = scalar_lea.hbm %s7, %s976
          %s978 = sshll.u32 %s968, 4
          %s979 = int_to_ptr.vmem [resolvable:$true] %s978
          %984 = dma.vmem_to_hbm [thread:$0]  %s979, 256, %s977, %s965, 128, 128, 8
        $region72: #{tpu_custom_call.1} parent=47 // pred_fallthru
          _
      $region48: #{tpu_custom_call.1} parent=5 // pred_fallthru
        _
      %p985 = scmp.le.s32.totalorder 2, %s22
      // Predicated region
      $region73: #{tpu_custom_call.1} parent=5 // pred_check
        %p986 = pneg %p985
      $region74: #{tpu_custom_call.1} parent=5 // pred_check_branch
        %988 = sbr.rel (%p986) target = $region76
      $region75: #{tpu_custom_call.1} parent=5 // pred_region
        %s989 = ssub.s32 %s22, 2
        // Predicated region
        $region77: #{tpu_custom_call.1} parent=75 // pred_check
          %p990 = pneg %p245
        $region78: #{tpu_custom_call.1} parent=75 // pred_check_branch
          %992 = sbr.rel (%p990) target = $region80
        $region79: #{tpu_custom_call.1} parent=75 // pred_region
          %s993 = sand.u32 %s230, 1
          %s994 = scalar_lea.sflag [#allocation5], %s993
          %s995 = sand.u32 %s230, 1
          %s996 = smul.addr %s995, 16
          %s997 = scalar_lea.vmem [#allocation9], %s996
          %998 = dma.done %s994, 256
        $region80: #{tpu_custom_call.1} parent=75 // pred_fallthru
          _
      $region76: #{tpu_custom_call.1} parent=5 // pred_fallthru
        _
    $region6: #{tpu_custom_call.1} parent=1 // loop_footer
      %s26 = sadd.s32 1, %s22
    $region7: #{tpu_custom_call.1} parent=1 // loop_footer_branch
      %21 = sbr.rel target = $region3
    $region8: #{tpu_custom_call.1} parent=1 // loop_exit
      _
    %999 = vsyncpa [#allocation4], 1
    %s1000 = scalar_lea.sflag [#allocation4], 1
    %1001 = vsyncpa %s1000, 1
    %1002 = vsyncpa [#allocation7], 1
    %s1003 = scalar_lea.sflag [#allocation7], 1
    %1004 = vsyncpa %s1003, 1
    %1005 = vsyncpa [#allocation5], 1
    %s1006 = scalar_lea.sflag [#allocation5], 1
    %1007 = vsyncpa %s1006, 1

</llo_original>
